<compile_context>
chip_gen: v6e
topology: v6e:2x2x1
jax: 0.10.0
libtpu: 0.0.40
codegen_flags: <defaults>
</compile_context>

<pallas_src>
import jax
import jax.numpy as jnp
from jax.experimental import pallas as pl
from jax.experimental.pallas import tpu as pltpu


def _round_up(x, m):
    return (x + m - 1) // m * m


def _tile_bytes(rows, cols, itemsize):
    """Bytes of a (rows, cols) VMEM value after (sublane, 128-lane) tiling."""
    sub = 8 * (4 // itemsize)            # 8 for f32, 16 for bf16
    return _round_up(max(rows, 1), sub) * _round_up(max(cols, 1), 128) * itemsize


def _step_vmem_bytes(th, wop, c_in, c_out_p, in_item, out_item):
    """Per-grid-step VMEM: double-buffered pipeline blocks + in-kernel temps."""
    def plane(rows, width):
        return rows * _tile_bytes(width, c_in, in_item)
    blocks = (plane(th + 1, wop + 1)                     # even-row / even-col (+halo)
              + plane(th + 1, wop)                       # even-row / odd-col  (+halo)
              + plane(th, wop + 1)                       # odd-row  / even-col
              + plane(th, wop)                           # odd-row  / odd-col
              + _tile_bytes(9 * c_in, c_out_p, in_item)  # weights (constant index map)
              + _tile_bytes(th * wop, c_out_p, out_item))  # output block
    temps = (2 * _tile_bytes(th * wop, 9 * c_in, in_item)  # tap slices + fused operand
             + _tile_bytes(th * wop, c_out_p, 4))          # f32 matmul result
    return 2 * blocks + temps


def _pick_block_rows(h_out, th_cap, wop, c_in, c_out_p, in_item, out_item, budget):
    """Largest output-row band height that fits the VMEM budget (<= th_cap)."""
    th = max(1, min(h_out, th_cap))
    while th > 1 and _step_vmem_bytes(th, wop, c_in, c_out_p, in_item, out_item) > budget:
        th -= 1
    return th


def _downsample_conv_kernel(ee_ref, eo_ref, oe_ref, oo_ref, w_ref, o_ref):
    """One (batch, row-band) step: build the fused (th*wop, 9*C_in) im2col
    operand from the four parity planes and do a single MXU matmul."""
    th, wo, c_in = oo_ref.shape

    ee = ee_ref[...]                      # (th+1, wop+1, C_in)  even rows / even cols
    eo = eo_ref[...]                      # (th+1, wop,   C_in)  even rows / odd  cols
    oe = oe_ref[...]                      # (th,   wop+1, C_in)  odd  rows / even cols
    oo = oo_ref[...]                      # (th,   wop,   C_in)  odd  rows / odd  cols
    planes = {(0, 0): ee, (0, 1): eo, (1, 0): oe, (1, 1): oo}

    taps = []
    for kh in range(3):
        ro, rp = divmod(kh, 2)            # row offset inside plane / row parity
        for kw in range(3):
            co, cp = divmod(kw, 2)        # col offset inside plane / col parity
            taps.append(planes[(rp, cp)][ro:ro + th, co:co + wo, :])

    # Fused reduction: K = 9*C_in in a single dot (no per-tap accumulator passes).
    patches = jnp.concatenate(taps, axis=-1).reshape(th * wo, 9 * c_in)
    acc = jnp.dot(patches, w_ref[...], preferred_element_type=jnp.float32)
    o_ref[...] = acc.astype(o_ref.dtype)


def downsample_forward(x_nchw, w_oihw, *, compute_dtype=jnp.bfloat16,
                       block_out_rows=None):
    """Conv2d(C_in, C_out, kernel=3, stride=2, padding=1, bias=False); NCHW in/out."""
    N, C_in, H, W = x_nchw.shape
    C_out, C_in_w, KH, KW = w_oihw.shape
    assert C_in_w == C_in and KH == 3 and KW == 3

    stride, pad = 2, 1
    H_out = (H + 2 * pad - KH) // stride + 1
    W_out = (W + 2 * pad - KW) // stride + 1

    out_dtype = x_nchw.dtype
    in_item = jnp.dtype(compute_dtype).itemsize
    out_item = jnp.dtype(out_dtype).itemsize
    row_align = 8 * (4 // in_item)              # sublane packing (8 f32 / 16 bf16)
    wop = _round_up(W_out, row_align)           # padded output width
    c_out_p = _round_up(C_out, 128)             # lane-dense padded output channels

    # ---- generation-aware VMEM sizing --------------------------------------
    try:
        vmem_cap = int(getattr(pltpu.get_tpu_info(), "vmem_capacity_bytes",
                               64 * 1024 * 1024))
    except Exception:
        vmem_cap = 64 * 1024 * 1024             # conservative (v7x-sized) fallback
    vmem_budget = vmem_cap // 3
    vmem_limit = max((vmem_cap * 3) // 4, 32 * 1024 * 1024)

    # N == 1: keep >= 2 row bands so both TensorCores (v7x) get work.
    th_cap = H_out if N >= 2 else max(1, -(-H_out // 2))
    if block_out_rows is not None:
        th = max(1, min(block_out_rows, H_out))
    else:
        th = _pick_block_rows(H_out, th_cap, wop, C_in, c_out_p,
                              in_item, out_item, vmem_budget)
    n_bands = -(-H_out // th)
    hop = n_bands * th                          # padded number of output rows
    m_blk = th * wop                            # flattened output rows per step

    # ---- XLA glue: parity (space-to-depth) planes ---------------------------
    # Output pixel (r, j) reads padded rows 2r..2r+2 / cols 2j..2j+2, so tap
    # (kh, kw) lives in plane (kh%2, kw%2) at offset (kh//2, kw//2).
    x = jnp.transpose(x_nchw, (0, 2, 3, 1)).astype(compute_dtype)       # NHWC
    x_pad = jnp.pad(x, ((0, 0), (pad, pad), (pad, pad), (0, 0)))

    ee = x_pad[:, 0:2 * H_out + 1:2, 0:2 * W_out + 1:2, :]   # (N, H_out+1, W_out+1, C)
    eo = x_pad[:, 0:2 * H_out + 1:2, 1:2 * W_out:2, :]       # (N, H_out+1, W_out,   C)
    oe = x_pad[:, 1:2 * H_out:2, 0:2 * W_out + 1:2, :]       # (N, H_out,   W_out+1, C)
    oo = x_pad[:, 1:2 * H_out:2, 1:2 * W_out:2, :]           # (N, H_out,   W_out,   C)

    def _pad_rc(p, rows, cols):
        dr, dc = rows - p.shape[1], cols - p.shape[2]
        return jnp.pad(p, ((0, 0), (0, dr), (0, dc), (0, 0))) if (dr or dc) else p

    ee = _pad_rc(ee, hop + 1, wop + 1)
    eo = _pad_rc(eo, hop + 1, wop)
    oe = _pad_rc(oe, hop, wop + 1)
    oo = _pad_rc(oo, hop, wop)

    # Band the even-row planes in the wrapper (1 duplicated halo row per band);
    # this replaces the in-kernel concatenate with a cheap fused XLA gather.
    row_idx = jnp.arange(n_bands)[:, None] * th + jnp.arange(th + 1)[None, :]
    ee_b = jnp.take(ee, row_idx, axis=1).reshape(N * n_bands, th + 1, wop + 1, C_in)
    eo_b = jnp.take(eo, row_idx, axis=1).reshape(N * n_bands, th + 1, wop, C_in)
    oe_b = oe.reshape(N * n_bands, th, wop + 1, C_in)
    oo_b = oo.reshape(N * n_bands, th, wop, C_in)

    # Weight: OIHW -> (9*C_in, C_out), K ordered (kh, kw, c) to match the
    # in-kernel tap concatenation; zero-padded to the full lane width.
    w_mat = jnp.transpose(w_oihw, (2, 3, 1, 0)).reshape(9 * C_in, C_out)
    w_mat = w_mat.astype(compute_dtype)
    if c_out_p != C_out:
        w_mat = jnp.pad(w_mat, ((0, 0), (0, c_out_p - C_out)))

    band_map = lambda n, i: (n * n_bands + i, 0, 0, 0)

    out_flat = pl.pallas_call(
        _downsample_conv_kernel,
        out_shape=jax.ShapeDtypeStruct((N, n_bands * m_blk, c_out_p), out_dtype),
        grid_spec=pltpu.PrefetchScalarGridSpec(
            num_scalar_prefetch=0,
            grid=(N, n_bands),
            in_specs=[
                pl.BlockSpec((None, th + 1, wop + 1, C_in), band_map),   # ee (+halo row)
                pl.BlockSpec((None, th + 1, wop, C_in), band_map),       # eo (+halo row)
                pl.BlockSpec((None, th, wop + 1, C_in), band_map),       # oe
                pl.BlockSpec((None, th, wop, C_in), band_map),           # oo
                # weights: constant index map -> fetched once, VMEM-resident
                pl.BlockSpec((9 * C_in, c_out_p), lambda n, i: (0, 0)),
            ],
            out_specs=pl.BlockSpec((None, m_blk, c_out_p), lambda n, i: (n, i, 0)),
        ),
        compiler_params=pltpu.CompilerParams(
            dimension_semantics=("parallel", "parallel"),
            vmem_limit_bytes=int(vmem_limit),
        ),
    )(ee_b, eo_b, oe_b, oo_b, w_mat)

    out = out_flat.reshape(N, hop, wop, c_out_p)[:, :H_out, :W_out, :C_out]
    return jnp.transpose(out, (0, 3, 1, 2)).astype(out_dtype)   # back to NCHW


if __name__ == "__main__":
    key = jax.random.PRNGKey(0)
    k_x, k_w = jax.random.split(key)

    # Small shapes consistent with the module: batch=2, channels 4 -> 8, 16x16.
    N, C_in, C_out, H, W = 2, 4, 8, 16, 16
    x = jax.random.normal(k_x, (N, C_in, H, W), dtype=jnp.float32)
    fan_in = C_in * 3 * 3  # nn.Conv2d weight shape OIHW = (C_out, C_in, 3, 3)
    w = jax.random.uniform(
        k_w, (C_out, C_in, 3, 3), jnp.float32,
        minval=-(fan_in ** -0.5), maxval=(fan_in ** -0.5),
    )

    y = jax.block_until_ready(downsample_forward(x, w))

    # Reference: XLA conv with the same semantics as PyTorch Conv2d.
    y_ref = jax.lax.conv_general_dilated(
        x, w, window_strides=(2, 2), padding=((1, 1), (1, 1)),
        dimension_numbers=("NCHW", "OIHW", "NCHW"),
    )
    assert y.shape == (N, C_out, H // 2, W // 2), y.shape
    # Default compute_dtype is bfloat16 (per perf review) => loosened tolerance
    # against the fp32 reference; accumulation is still f32.
    max_err = float(jnp.max(jnp.abs(y - y_ref)))
    assert max_err < 5e-2, max_err

    print("KERNEL_OK")
</pallas_src>

<mosaic_0001>
module attributes {stable_mosaic.version = 11 : i64} {
  func.func @_downsample_conv_kernel(%arg0: i32, %arg1: i32, %arg2: memref<1x9x17x4xbf16, #tpu.memory_space<vmem>>, %arg3: memref<1x9x16x4xbf16, #tpu.memory_space<vmem>>, %arg4: memref<1x8x17x4xbf16, #tpu.memory_space<vmem>>, %arg5: memref<1x8x16x4xbf16, #tpu.memory_space<vmem>>, %arg6: memref<36x128xbf16, #tpu.memory_space<vmem>>, %arg7: memref<1x128x128xf32, #tpu.memory_space<vmem>>) attributes {dimension_semantics = [#tpu.dimension_semantics<parallel>, #tpu.dimension_semantics<parallel>], iteration_bounds = array<i64: 2, 1>, scalar_prefetch = 0 : i64, scratch_operands = 0 : i64, tpu.core_type = #tpu.core_type<tc>, window_params = [{transform_indices = @transform_0, window_bounds = array<i64: 1, 9, 17, 4>}, {transform_indices = @transform_1, window_bounds = array<i64: 1, 9, 16, 4>}, {transform_indices = @transform_2, window_bounds = array<i64: 1, 8, 17, 4>}, {transform_indices = @transform_3, window_bounds = array<i64: 1, 8, 16, 4>}, {pipeline_mode = #tpu.pipeline_mode<synchronous>, transform_indices = @transform_4, window_bounds = array<i64: 36, 128>}, {transform_indices = @transform_5, window_bounds = array<i64: 1, 128, 128>}]} {
    %c0 = arith.constant 0 : index
    %c0_0 = arith.constant 0 : index
    %c0_1 = arith.constant 0 : index
    %c0_2 = arith.constant 0 : index
    %0 = vector.load %arg2[%c0, %c0_0, %c0_1, %c0_2] : memref<1x9x17x4xbf16, #tpu.memory_space<vmem>>, vector<1x9x17x4xbf16>
    %1 = vector.shape_cast %0 : vector<1x9x17x4xbf16> to vector<9x17x4xbf16>
    %c0_3 = arith.constant 0 : index
    %c0_4 = arith.constant 0 : index
    %c0_5 = arith.constant 0 : index
    %c0_6 = arith.constant 0 : index
    %2 = vector.load %arg3[%c0_3, %c0_4, %c0_5, %c0_6] : memref<1x9x16x4xbf16, #tpu.memory_space<vmem>>, vector<1x9x16x4xbf16>
    %3 = vector.shape_cast %2 : vector<1x9x16x4xbf16> to vector<9x16x4xbf16>
    %c0_7 = arith.constant 0 : index
    %c0_8 = arith.constant 0 : index
    %c0_9 = arith.constant 0 : index
    %c0_10 = arith.constant 0 : index
    %4 = vector.load %arg4[%c0_7, %c0_8, %c0_9, %c0_10] : memref<1x8x17x4xbf16, #tpu.memory_space<vmem>>, vector<1x8x17x4xbf16>
    %5 = vector.shape_cast %4 : vector<1x8x17x4xbf16> to vector<8x17x4xbf16>
    %c0_11 = arith.constant 0 : index
    %c0_12 = arith.constant 0 : index
    %c0_13 = arith.constant 0 : index
    %c0_14 = arith.constant 0 : index
    %6 = vector.load %arg5[%c0_11, %c0_12, %c0_13, %c0_14] : memref<1x8x16x4xbf16, #tpu.memory_space<vmem>>, vector<1x8x16x4xbf16>
    %7 = vector.shape_cast %6 : vector<1x8x16x4xbf16> to vector<8x16x4xbf16>
    %8 = vector.extract_strided_slice %1 {offsets = [0, 0, 0], sizes = [8, 16, 4], strides = [1, 1, 1]} : vector<9x17x4xbf16> to vector<8x16x4xbf16>
    %9 = vector.extract_strided_slice %3 {offsets = [0, 0, 0], sizes = [8, 16, 4], strides = [1, 1, 1]} : vector<9x16x4xbf16> to vector<8x16x4xbf16>
    %10 = vector.extract_strided_slice %1 {offsets = [0, 1, 0], sizes = [8, 16, 4], strides = [1, 1, 1]} : vector<9x17x4xbf16> to vector<8x16x4xbf16>
    %11 = vector.extract_strided_slice %5 {offsets = [0, 0, 0], sizes = [8, 16, 4], strides = [1, 1, 1]} : vector<8x17x4xbf16> to vector<8x16x4xbf16>
    %12 = vector.extract_strided_slice %5 {offsets = [0, 1, 0], sizes = [8, 16, 4], strides = [1, 1, 1]} : vector<8x17x4xbf16> to vector<8x16x4xbf16>
    %13 = vector.extract_strided_slice %1 {offsets = [1, 0, 0], sizes = [8, 16, 4], strides = [1, 1, 1]} : vector<9x17x4xbf16> to vector<8x16x4xbf16>
    %14 = vector.extract_strided_slice %3 {offsets = [1, 0, 0], sizes = [8, 16, 4], strides = [1, 1, 1]} : vector<9x16x4xbf16> to vector<8x16x4xbf16>
    %15 = vector.extract_strided_slice %1 {offsets = [1, 1, 0], sizes = [8, 16, 4], strides = [1, 1, 1]} : vector<9x17x4xbf16> to vector<8x16x4xbf16>
    %16 = tpu.concatenate %8, %9, %10, %11, %7, %12, %13, %14, %15 in 2 : vector<8x16x4xbf16>, vector<8x16x4xbf16>, vector<8x16x4xbf16>, vector<8x16x4xbf16>, vector<8x16x4xbf16>, vector<8x16x4xbf16>, vector<8x16x4xbf16>, vector<8x16x4xbf16>, vector<8x16x4xbf16> -> vector<8x16x36xbf16>
    %17 = vector.shape_cast %16 : vector<8x16x36xbf16> to vector<128x36xbf16>
    %c0_15 = arith.constant 0 : index
    %c0_16 = arith.constant 0 : index
    %18 = vector.load %arg6[%c0_15, %c0_16] : memref<36x128xbf16, #tpu.memory_space<vmem>>, vector<36x128xbf16>
    %cst = arith.constant dense<0.000000e+00> : vector<128x128xf32>
    %19 = tpu.matmul %17, %18, %cst {dimension_numbers = #tpu.dot_dimension_numbers<[1], [0], [0], [1], [0, 0, 1, 1], [], []>} : vector<128x36xbf16>, vector<36x128xbf16>, vector<128x128xf32> -> vector<128x128xf32>
    %c0_17 = arith.constant 0 : index
    %c0_18 = arith.constant 0 : index
    %c0_19 = arith.constant 0 : index
    %20 = vector.load %arg7[%c0_17, %c0_18, %c0_19] : memref<1x128x128xf32, #tpu.memory_space<vmem>>, vector<1x128x128xf32>
    %21 = vector.shape_cast %20 : vector<1x128x128xf32> to vector<128x128xf32>
    %22 = vector.shape_cast %19 : vector<128x128xf32> to vector<1x128x128xf32>
    tpu.vector_store %arg7[%c0_17, %c0_18, %c0_19], %22 {strides = array<i32>} : memref<1x128x128xf32, #tpu.memory_space<vmem>>, vector<1x128x128xf32>,
    return
  }
  func.func @transform_0(%arg0: i32, %arg1: i32) -> (i32, i32, i32, i32) {
    %c1_i32 = arith.constant 1 : i32
    %0 = arith.muli %arg0, %c1_i32 : i32
    %1 = arith.addi %0, %arg1 : i32
    %c0_i32 = arith.constant 0 : i32
    %c0_i32_0 = arith.constant 0 : i32
    %c0_i32_1 = arith.constant 0 : i32
    %c0_i32_2 = arith.constant 0 : i32
    return %1, %c0_i32, %c0_i32_0, %c0_i32_1 : i32, i32, i32, i32
  }
  func.func @transform_1(%arg0: i32, %arg1: i32) -> (i32, i32, i32, i32) {
    %c1_i32 = arith.constant 1 : i32
    %0 = arith.muli %arg0, %c1_i32 : i32
    %1 = arith.addi %0, %arg1 : i32
    %c0_i32 = arith.constant 0 : i32
    %c0_i32_0 = arith.constant 0 : i32
    %c0_i32_1 = arith.constant 0 : i32
    %c0_i32_2 = arith.constant 0 : i32
    return %1, %c0_i32, %c0_i32_0, %c0_i32_1 : i32, i32, i32, i32
  }
  func.func @transform_2(%arg0: i32, %arg1: i32) -> (i32, i32, i32, i32) {
    %c1_i32 = arith.constant 1 : i32
    %0 = arith.muli %arg0, %c1_i32 : i32
    %1 = arith.addi %0, %arg1 : i32
    %c0_i32 = arith.constant 0 : i32
    %c0_i32_0 = arith.constant 0 : i32
    %c0_i32_1 = arith.constant 0 : i32
    %c0_i32_2 = arith.constant 0 : i32
    return %1, %c0_i32, %c0_i32_0, %c0_i32_1 : i32, i32, i32, i32
  }
  func.func @transform_3(%arg0: i32, %arg1: i32) -> (i32, i32, i32, i32) {
    %c1_i32 = arith.constant 1 : i32
    %0 = arith.muli %arg0, %c1_i32 : i32
    %1 = arith.addi %0, %arg1 : i32
    %c0_i32 = arith.constant 0 : i32
    %c0_i32_0 = arith.constant 0 : i32
    %c0_i32_1 = arith.constant 0 : i32
    %c0_i32_2 = arith.constant 0 : i32
    return %1, %c0_i32, %c0_i32_0, %c0_i32_1 : i32, i32, i32, i32
  }
  func.func @transform_4(%arg0: i32, %arg1: i32) -> (i32, i32) {
    %c0_i32 = arith.constant 0 : i32
    %c0_i32_0 = arith.constant 0 : i32
    %c0_i32_1 = arith.constant 0 : i32
    return %c0_i32, %c0_i32_0 : i32, i32
  }
  func.func @transform_5(%arg0: i32, %arg1: i32) -> (i32, i32, i32) {
    %c0_i32 = arith.constant 0 : i32
    %c0_i32_0 = arith.constant 0 : i32
    return %arg0, %arg1, %c0_i32 : i32, i32, i32
  }
}

</mosaic_0001>

<llo_original>
// kernel: tpu_custom_call.1
$region0: #{tpu_custom_call.1}
  #allocation0 [shape = 'u32[]', space=smem, size = 0x4, offset = 0x4, fixed_abs, tag = 'smem constant byte address 0x4 - core index']
  #allocation1 [shape = 'u32[144,128]{1,0:T(1,128)}', space=vmem, size = 0x12000, scoped, tag = 'internal scratch']
  %s0 = inlined_call_operand.vmem [shape: bf16[2,9,17,4], index: 0, kind: input, shape index: {}]
  %s1 = inlined_call_operand.vmem [shape: bf16[2,9,16,4], index: 1, kind: input, shape index: {}]
  %s2 = inlined_call_operand.vmem [shape: bf16[2,8,17,4], index: 2, kind: input, shape index: {}]
  %s3 = inlined_call_operand.vmem [shape: bf16[2,8,16,4], index: 3, kind: input, shape index: {}]
  %s4 = inlined_call_operand.vmem [shape: bf16[36,128], index: 4, kind: input, shape index: {}]
  %s5 = inlined_call_operand.hbm [shape: f32[2,128,128], index: 5, kind: output, shape index: {}]
  %s6 = sld [smem:[#allocation0]]
  $region53: #{tpu_custom_call.1} parent=0
    _
  %s8 = ssub.s32 1, %s6
  %s9 = scalar_select 0, %s8, %s6
  $region1: #{tpu_custom_call.1} parent=0
    #allocation2 [shape = 'u8[131072]{0}', space=vmem, size = 0x20000, scoped, tag = 'output window, operand 0']
    #allocation3 [shape = 's32[2]{0}', space=sflag, size = 0x8, scoped, tag = 'scoped memory for tpu_custom_call.1']
    %10 = vsyncpa [#allocation3], 0
    %s11 = scalar_lea.sflag [#allocation3], 1
    %12 = vsyncpa %s11, 0
    loop: start=0, step=1, limit=4
    $region2: #{tpu_custom_call.1} parent=1 // loop_pre_header
      _
    $region3: #{tpu_custom_call.1} parent=1 // loop_header
      %s14 = sphi 0, %s18
      %p15 = scmp.ge.s32.totalorder %s14, 4
      %s21 = sphi 0, %s33
      %s22 = sphi 0, %s29
      %s23 = sphi 0, %s21
      %s24 = sphi 0, %s22
      %s25 = sphi 0, %s23
      %s26 = sphi 0, %s24
      %s38 = sphi 0, %s40
      %s41 = sphi 0, %s38
      %s42 = sphi 0, %s41
      %s58 = sphi 0, %s42
      %s66 = sphi 0, %s68
      %s69 = sphi 0, %s66
      %s70 = sphi 0, %s69
      %s86 = sphi 0, %s70
      %s94 = sphi 0, %s96
      %s97 = sphi 0, %s94
      %s98 = sphi 0, %s97
      %s114 = sphi 0, %s98
      %s122 = sphi 0, %s124
      %s125 = sphi 0, %s122
      %s126 = sphi 0, %s125
      %s142 = sphi 0, %s126
      %s146 = sphi 0, %s146
      %s148 = sphi 0, %s146
      %s149 = sphi 0, %s148
      %s163 = sphi 0, %s149
      %s171 = sphi 0, %s173
      %s174 = sphi 0, %s171
      %s175 = sphi 0, %s174
      %s191 = sphi 0, %s175
    $region4: #{tpu_custom_call.1} parent=1 // loop_header_branch
      %17 = sbr.rel (%p15) target = $region8
    $region5: #{tpu_custom_call.1} parent=1 // loop_body
      %s19 = ssub.s32 %s14, 1
      %s20 = ssub.s32 %s14, 2
      %s27 = sadd.s32 1, %s22
      %p28 = scmp.ge.s32.totalorder %s27, 1
      %s29 = scalar_select %p28, 0, %s27
      %s30 = sadd.s32 1, %s21
      %s31 = scalar_select %p28, %s30, %s21
      %p32 = scmp.ge.s32.totalorder %s31, 2
      %s33 = scalar_select %p32, 0, %s31
      %s34 = sadd.s32 %s21, %s22
      %s35 = sadd.s32 %s33, %s29
      %s36 = ssub.s32 %s34, %s35
      %p37 = scmp.eq.s32.totalorder %s36, 0
      %s39 = sadd.s32 %s38, 1
      %s40 = scalar_select %p37, %s38, %s39
      %p43 = pneg %p37
      %p44 = scmp.eq.s32.totalorder %s14, 1
      %p45 = por %p43, %p44
      %p46 = scmp.ne.s32.totalorder %s38, %s41
      %p47 = scmp.eq.s32.totalorder %s14, 0
      %p48 = por %p46, %p47
      %p49 = scmp.ne.s32.totalorder %s38, %s41
      %p50 = scmp.eq.s32.totalorder %s19, 1
      %p51 = por %p49, %p50
      %p52 = scmp.ne.s32.totalorder %s41, %s42
      %p53 = scmp.eq.s32.totalorder %s19, 0
      %p54 = por %p52, %p53
      %p55 = scmp.ne.s32.totalorder %s41, %s42
      %p56 = scmp.eq.s32.totalorder %s20, 1
      %p57 = por %p55, %p56
      %p59 = scmp.ne.s32.totalorder %s42, %s58
      %p60 = scmp.eq.s32.totalorder %s20, 0
      %p61 = por %p59, %p60
      %s62 = sadd.s32 %s21, %s22
      %s63 = sadd.s32 %s33, %s29
      %s64 = ssub.s32 %s62, %s63
      %p65 = scmp.eq.s32.totalorder %s64, 0
      %s67 = sadd.s32 %s66, 1
      %s68 = scalar_select %p65, %s66, %s67
      %p71 = pneg %p65
      %p72 = scmp.eq.s32.totalorder %s14, 1
      %p73 = por %p71, %p72
      %p74 = scmp.ne.s32.totalorder %s66, %s69
      %p75 = scmp.eq.s32.totalorder %s14, 0
      %p76 = por %p74, %p75
      %p77 = scmp.ne.s32.totalorder %s66, %s69
      %p78 = scmp.eq.s32.totalorder %s19, 1
      %p79 = por %p77, %p78
      %p80 = scmp.ne.s32.totalorder %s69, %s70
      %p81 = scmp.eq.s32.totalorder %s19, 0
      %p82 = por %p80, %p81
      %p83 = scmp.ne.s32.totalorder %s69, %s70
      %p84 = scmp.eq.s32.totalorder %s20, 1
      %p85 = por %p83, %p84
      %p87 = scmp.ne.s32.totalorder %s70, %s86
      %p88 = scmp.eq.s32.totalorder %s20, 0
      %p89 = por %p87, %p88
      %s90 = sadd.s32 %s21, %s22
      %s91 = sadd.s32 %s33, %s29
      %s92 = ssub.s32 %s90, %s91
      %p93 = scmp.eq.s32.totalorder %s92, 0
      %s95 = sadd.s32 %s94, 1
      %s96 = scalar_select %p93, %s94, %s95
      %p99 = pneg %p93
      %p100 = scmp.eq.s32.totalorder %s14, 1
      %p101 = por %p99, %p100
      %p102 = scmp.ne.s32.totalorder %s94, %s97
      %p103 = scmp.eq.s32.totalorder %s14, 0
      %p104 = por %p102, %p103
      %p105 = scmp.ne.s32.totalorder %s94, %s97
      %p106 = scmp.eq.s32.totalorder %s19, 1
      %p107 = por %p105, %p106
      %p108 = scmp.ne.s32.totalorder %s97, %s98
      %p109 = scmp.eq.s32.totalorder %s19, 0
      %p110 = por %p108, %p109
      %p111 = scmp.ne.s32.totalorder %s97, %s98
      %p112 = scmp.eq.s32.totalorder %s20, 1
      %p113 = por %p111, %p112
      %p115 = scmp.ne.s32.totalorder %s98, %s114
      %p116 = scmp.eq.s32.totalorder %s20, 0
      %p117 = por %p115, %p116
      %s118 = sadd.s32 %s21, %s22
      %s119 = sadd.s32 %s33, %s29
      %s120 = ssub.s32 %s118, %s119
      %p121 = scmp.eq.s32.totalorder %s120, 0
      %s123 = sadd.s32 %s122, 1
      %s124 = scalar_select %p121, %s122, %s123
      %p127 = pneg %p121
      %p128 = scmp.eq.s32.totalorder %s14, 1
      %p129 = por %p127, %p128
      %p130 = scmp.ne.s32.totalorder %s122, %s125
      %p131 = scmp.eq.s32.totalorder %s14, 0
      %p132 = por %p130, %p131
      %p133 = scmp.ne.s32.totalorder %s122, %s125
      %p134 = scmp.eq.s32.totalorder %s19, 1
      %p135 = por %p133, %p134
      %p136 = scmp.ne.s32.totalorder %s125, %s126
      %p137 = scmp.eq.s32.totalorder %s19, 0
      %p138 = por %p136, %p137
      %p139 = scmp.ne.s32.totalorder %s125, %s126
      %p140 = scmp.eq.s32.totalorder %s20, 1
      %p141 = por %p139, %p140
      %p143 = scmp.ne.s32.totalorder %s126, %s142
      %p144 = scmp.eq.s32.totalorder %s20, 0
      %p145 = por %p143, %p144
      %s147 = sadd.s32 %s146, 1
      %p150 = scmp.eq.s32.totalorder %s14, 1
      %p151 = scmp.ne.s32.totalorder %s146, %s148
      %p152 = scmp.eq.s32.totalorder %s14, 0
      %p153 = por %p151, %p152
      %p154 = scmp.ne.s32.totalorder %s146, %s148
      %p155 = scmp.eq.s32.totalorder %s19, 1
      %p156 = por %p154, %p155
      %p157 = scmp.ne.s32.totalorder %s148, %s149
      %p158 = scmp.eq.s32.totalorder %s19, 0
      %p159 = por %p157, %p158
      %p160 = scmp.ne.s32.totalorder %s148, %s149
      %p161 = scmp.eq.s32.totalorder %s20, 1
      %p162 = por %p160, %p161
      %p164 = scmp.ne.s32.totalorder %s149, %s163
      %p165 = scmp.eq.s32.totalorder %s20, 0
      %p166 = por %p164, %p165
      %s167 = ssub.s32 %s21, %s33
      %s168 = ssub.s32 %s22, %s29
      %s169 = sor.u32 %s167, %s168
      %p170 = scmp.eq.s32.totalorder %s169, 0
      %s172 = sadd.s32 %s171, 1
      %s173 = scalar_select %p170, %s171, %s172
      %p176 = pneg %p170
      %p177 = scmp.eq.s32.totalorder %s14, 1
      %p178 = por %p176, %p177
      %p179 = scmp.ne.s32.totalorder %s171, %s174
      %p180 = scmp.eq.s32.totalorder %s14, 0
      %p181 = por %p179, %p180
      %p182 = scmp.ne.s32.totalorder %s171, %s174
      %p183 = scmp.eq.s32.totalorder %s19, 1
      %p184 = por %p182, %p183
      %p185 = scmp.ne.s32.totalorder %s174, %s175
      %p186 = scmp.eq.s32.totalorder %s19, 0
      %p187 = por %p185, %p186
      %p188 = scmp.ne.s32.totalorder %s174, %s175
      %p189 = scmp.eq.s32.totalorder %s20, 1
      %p190 = por %p188, %p189
      %p192 = scmp.ne.s32.totalorder %s175, %s191
      %p193 = scmp.eq.s32.totalorder %s20, 0
      %p194 = por %p192, %p193
      %p195 = scmp.le.s32.totalorder 1, %s14
      %p196 = scmp.lt.s32.totalorder %s14, 3
      %p197 = pnand %p195, %p196
      %p198 = pneg %p197
      // Predicated region
      $region9: #{tpu_custom_call.1} parent=5 // pred_check
        _
      $region10: #{tpu_custom_call.1} parent=5 // pred_check_branch
        %200 = sbr.rel (%p197) target = $region12
      $region11: #{tpu_custom_call.1} parent=5 // pred_region
        %s201 = ssub.s32 %s14, 1
        // Predicated region
        $region13: #{tpu_custom_call.1} parent=11 // pred_check
          %p202 = pneg %p159
        $region14: #{tpu_custom_call.1} parent=11 // pred_check_branch
          %204 = sbr.rel (%p202) target = $region16
        $region15: #{tpu_custom_call.1} parent=11 // pred_region
          _
        $region16: #{tpu_custom_call.1} parent=11 // pred_fallthru
          _
      $region12: #{tpu_custom_call.1} parent=5 // pred_fallthru
        _
      %p205 = scmp.lt.s32.totalorder %s14, 2
      // Predicated region
      $region17: #{tpu_custom_call.1} parent=5 // pred_check
        %p206 = pneg %p205
      $region18: #{tpu_custom_call.1} parent=5 // pred_check_branch
        %208 = sbr.rel (%p206) target = $region20
      $region19: #{tpu_custom_call.1} parent=5 // pred_region
        // Predicated region
        $region21: #{tpu_custom_call.1} parent=19 // pred_check
          %p209 = pneg %p48
        $region22: #{tpu_custom_call.1} parent=19 // pred_check_branch
          %211 = sbr.rel (%p209) target = $region24
        $region23: #{tpu_custom_call.1} parent=19 // pred_region
          %s212 = sadd.s32 %s21, %s22
          %p213 = scmp.lt.s32.totalorder %s212, 1
          %s214 = scalar_select %p213, %s212, 1
          %s215 = smul.addr %s214, 27
          %s216 = smul.addr %s215, 4
          %s217 = scalar_lea.vmem %s0, %s216
          %s218 = sadd.s32 %s21, %s22
        $region24: #{tpu_custom_call.1} parent=19 // pred_fallthru
          _
        // Predicated region
        $region25: #{tpu_custom_call.1} parent=19 // pred_check
          %p219 = pneg %p76
        $region26: #{tpu_custom_call.1} parent=19 // pred_check_branch
          %221 = sbr.rel (%p219) target = $region28
        $region27: #{tpu_custom_call.1} parent=19 // pred_region
          %s222 = sadd.s32 %s21, %s22
          %p223 = scmp.lt.s32.totalorder %s222, 1
          %s224 = scalar_select %p223, %s222, 1
          %s225 = smul.addr %s224, 18
          %s226 = smul.addr %s225, 4
          %s227 = scalar_lea.vmem %s1, %s226
          %s228 = sadd.s32 %s21, %s22
        $region28: #{tpu_custom_call.1} parent=19 // pred_fallthru
          _
        // Predicated region
        $region29: #{tpu_custom_call.1} parent=19 // pred_check
          %p229 = pneg %p104
        $region30: #{tpu_custom_call.1} parent=19 // pred_check_branch
          %231 = sbr.rel (%p229) target = $region32
        $region31: #{tpu_custom_call.1} parent=19 // pred_region
          %s232 = sadd.s32 %s21, %s22
          %p233 = scmp.lt.s32.totalorder %s232, 1
          %s234 = scalar_select %p233, %s232, 1
          %s235 = smul.addr %s234, 24
          %s236 = smul.addr %s235, 4
          %s237 = scalar_lea.vmem %s2, %s236
          %s238 = sadd.s32 %s21, %s22
        $region32: #{tpu_custom_call.1} parent=19 // pred_fallthru
          _
        // Predicated region
        $region33: #{tpu_custom_call.1} parent=19 // pred_check
          %p239 = pneg %p132
        $region34: #{tpu_custom_call.1} parent=19 // pred_check_branch
          %241 = sbr.rel (%p239) target = $region36
        $region35: #{tpu_custom_call.1} parent=19 // pred_region
          %s242 = sadd.s32 %s21, %s22
          %p243 = scmp.lt.s32.totalorder %s242, 1
          %s244 = scalar_select %p243, %s242, 1
          %s245 = smul.addr %s244, 16
          %s246 = smul.addr %s245, 4
          %s247 = scalar_lea.vmem %s3, %s246
          %s248 = sadd.s32 %s21, %s22
        $region36: #{tpu_custom_call.1} parent=19 // pred_fallthru
          _
      $region20: #{tpu_custom_call.1} parent=5 // pred_fallthru
        _
      %p249 = scmp.le.s32.totalorder 1, %s14
      %p250 = scmp.lt.s32.totalorder %s14, 3
      %p251 = pnand %p249, %p250
      %p252 = pneg %p251
      // Predicated region
      $region37: #{tpu_custom_call.1} parent=5 // pred_check
        _
      $region38: #{tpu_custom_call.1} parent=5 // pred_check_branch
        %254 = sbr.rel (%p251) target = $region40
      $region39: #{tpu_custom_call.1} parent=5 // pred_region
        %s255 = ssub.s32 %s14, 1
        %s256 = sadd.s32 %s23, %s24
        %p257 = scmp.lt.s32.totalorder %s256, 1
        %s258 = scalar_select %p257, %s256, 1
        %s259 = smul.addr %s258, 27
        %s260 = smul.addr %s259, 4
        %s261 = scalar_lea.vmem %s0, %s260
        %p262 = pneg %p54
        %p263 = pneg %p51
        %s264 = sadd.s32 %s23, %s24
        %p265 = scmp.lt.s32.totalorder %s264, 1
        %s266 = scalar_select %p265, %s264, 1
        %s267 = smul.addr %s266, 18
        %s268 = smul.addr %s267, 4
        %s269 = scalar_lea.vmem %s1, %s268
        %p270 = pneg %p82
        %p271 = pneg %p79
        %s272 = sadd.s32 %s23, %s24
        %p273 = scmp.lt.s32.totalorder %s272, 1
        %s274 = scalar_select %p273, %s272, 1
        %s275 = smul.addr %s274, 24
        %s276 = smul.addr %s275, 4
        %s277 = scalar_lea.vmem %s2, %s276
        %p278 = pneg %p110
        %p279 = pneg %p107
        %s280 = sadd.s32 %s23, %s24
        %p281 = scmp.lt.s32.totalorder %s280, 1
        %s282 = scalar_select %p281, %s280, 1
        %s283 = smul.addr %s282, 16
        %s284 = smul.addr %s283, 4
        %s285 = scalar_lea.vmem %s3, %s284
        %p286 = pneg %p138
        %p287 = pneg %p135
        %p288 = pneg %p159
        %p289 = pneg %p156
        %p290 = pneg %p187
        %p291 = pneg %p184
        %s292 = sand.u32 %s174, 1
        %s293 = scalar_lea.sflag [#allocation3], %s292
        %s294 = sand.u32 %s174, 1
        %s295 = smul.addr %s294, 128
        %s296 = scalar_lea.vmem [#allocation2], %s295
        %s297 = sadd.s32 %s23, %s24
        %p298 = scmp.lt.s32.totalorder %s297, 1
        %s299 = scalar_select %p298, %s297, 1
        %s300 = smul.addr %s299, 27
        %s301 = smul.addr %s300, 4
        %s302 = scalar_lea.vmem %s0, %s301
        %s303 = sadd.s32 %s23, %s24
        %s304 = sadd.s32 %s23, %s24
        %p305 = scmp.lt.s32.totalorder %s304, 1
        %s306 = scalar_select %p305, %s304, 1
        %s307 = smul.addr %s306, 18
        %s308 = smul.addr %s307, 4
        %s309 = scalar_lea.vmem %s1, %s308
        %s310 = sadd.s32 %s23, %s24
        %s311 = sadd.s32 %s23, %s24
        %p312 = scmp.lt.s32.totalorder %s311, 1
        %s313 = scalar_select %p312, %s311, 1
        %s314 = smul.addr %s313, 24
        %s315 = smul.addr %s314, 4
        %s316 = scalar_lea.vmem %s2, %s315
        %s317 = sadd.s32 %s23, %s24
        %s318 = sadd.s32 %s23, %s24
        %p319 = scmp.lt.s32.totalorder %s318, 1
        %s320 = scalar_select %p319, %s318, 1
        %s321 = smul.addr %s320, 16
        %s322 = smul.addr %s321, 4
        %s323 = scalar_lea.vmem %s3, %s322
        %s324 = sadd.s32 %s23, %s24
        %s325 = smul.u32 16, %s24
        %v327 = vld [vmem:[%s302] sm:$0xf]
        %v328 = vld [vmem:[%s302 + $0x4] sm:$0xf]
        %v329 = vld [vmem:[%s302 + $0x8] sm:$0x1]
        %v330 = vld [vmem:[%s302 + $0xc] sm:$0xf]
        %v331 = vld [vmem:[%s302 + $0x10] sm:$0xf]
        %v332 = vld [vmem:[%s302 + $0x14] sm:$0x1]
        %v333 = vld [vmem:[%s302 + $0x18] sm:$0xf]
        %v334 = vld [vmem:[%s302 + $0x1c] sm:$0xf]
        %v335 = vld [vmem:[%s302 + $0x20] sm:$0x1]
        %v336 = vld [vmem:[%s302 + $0x24] sm:$0xf]
        %v337 = vld [vmem:[%s302 + $0x28] sm:$0xf]
        %v338 = vld [vmem:[%s302 + $0x2c] sm:$0x1]
        %v339 = vld [vmem:[%s302 + $0x30] sm:$0xf]
        %v340 = vld [vmem:[%s302 + $0x34] sm:$0xf]
        %v341 = vld [vmem:[%s302 + $0x38] sm:$0x1]
        %v342 = vld [vmem:[%s302 + $0x3c] sm:$0xf]
        %v343 = vld [vmem:[%s302 + $0x40] sm:$0xf]
        %v344 = vld [vmem:[%s302 + $0x44] sm:$0x1]
        %v345 = vld [vmem:[%s302 + $0x48] sm:$0xf]
        %v346 = vld [vmem:[%s302 + $0x4c] sm:$0xf]
        %v347 = vld [vmem:[%s302 + $0x50] sm:$0x1]
        %v348 = vld [vmem:[%s302 + $0x54] sm:$0xf]
        %v349 = vld [vmem:[%s302 + $0x58] sm:$0xf]
        %v350 = vld [vmem:[%s302 + $0x5c] sm:$0x1]
        %v351 = vld [vmem:[%s302 + $0x60] sm:$0xf]
        %v352 = vld [vmem:[%s302 + $0x64] sm:$0xf]
        %v353 = vld [vmem:[%s302 + $0x68] sm:$0x1]
        %v354 = vld [vmem:[%s309] sm:$0xf]
        %v355 = vld [vmem:[%s309 + $0x4] sm:$0xf]
        %v356 = vld [vmem:[%s309 + $0x8] sm:$0xf]
        %v357 = vld [vmem:[%s309 + $0xc] sm:$0xf]
        %v358 = vld [vmem:[%s309 + $0x10] sm:$0xf]
        %v359 = vld [vmem:[%s309 + $0x14] sm:$0xf]
        %v360 = vld [vmem:[%s309 + $0x18] sm:$0xf]
        %v361 = vld [vmem:[%s309 + $0x1c] sm:$0xf]
        %v362 = vld [vmem:[%s309 + $0x20] sm:$0xf]
        %v363 = vld [vmem:[%s309 + $0x24] sm:$0xf]
        %v364 = vld [vmem:[%s309 + $0x28] sm:$0xf]
        %v365 = vld [vmem:[%s309 + $0x2c] sm:$0xf]
        %v366 = vld [vmem:[%s309 + $0x30] sm:$0xf]
        %v367 = vld [vmem:[%s309 + $0x34] sm:$0xf]
        %v368 = vld [vmem:[%s309 + $0x38] sm:$0xf]
        %v369 = vld [vmem:[%s309 + $0x3c] sm:$0xf]
        %v370 = vld [vmem:[%s309 + $0x40] sm:$0xf]
        %v371 = vld [vmem:[%s309 + $0x44] sm:$0xf]
        %v372 = vld [vmem:[%s316] sm:$0xf]
        %v373 = vld [vmem:[%s316 + $0x4] sm:$0xf]
        %v374 = vld [vmem:[%s316 + $0x8] sm:$0x1]
        %v375 = vld [vmem:[%s316 + $0xc] sm:$0xf]
        %v376 = vld [vmem:[%s316 + $0x10] sm:$0xf]
        %v377 = vld [vmem:[%s316 + $0x14] sm:$0x1]
        %v378 = vld [vmem:[%s316 + $0x18] sm:$0xf]
        %v379 = vld [vmem:[%s316 + $0x1c] sm:$0xf]
        %v380 = vld [vmem:[%s316 + $0x20] sm:$0x1]
        %v381 = vld [vmem:[%s316 + $0x24] sm:$0xf]
        %v382 = vld [vmem:[%s316 + $0x28] sm:$0xf]
        %v383 = vld [vmem:[%s316 + $0x2c] sm:$0x1]
        %v384 = vld [vmem:[%s316 + $0x30] sm:$0xf]
        %v385 = vld [vmem:[%s316 + $0x34] sm:$0xf]
        %v386 = vld [vmem:[%s316 + $0x38] sm:$0x1]
        %v387 = vld [vmem:[%s316 + $0x3c] sm:$0xf]
        %v388 = vld [vmem:[%s316 + $0x40] sm:$0xf]
        %v389 = vld [vmem:[%s316 + $0x44] sm:$0x1]
        %v390 = vld [vmem:[%s316 + $0x48] sm:$0xf]
        %v391 = vld [vmem:[%s316 + $0x4c] sm:$0xf]
        %v392 = vld [vmem:[%s316 + $0x50] sm:$0x1]
        %v393 = vld [vmem:[%s316 + $0x54] sm:$0xf]
        %v394 = vld [vmem:[%s316 + $0x58] sm:$0xf]
        %v395 = vld [vmem:[%s316 + $0x5c] sm:$0x1]
        %v396 = vld [vmem:[%s323] sm:$0xf]
        %v397 = vld [vmem:[%s323 + $0x4] sm:$0xf]
        %v398 = vld [vmem:[%s323 + $0x8] sm:$0xf]
        %v399 = vld [vmem:[%s323 + $0xc] sm:$0xf]
        %v400 = vld [vmem:[%s323 + $0x10] sm:$0xf]
        %v401 = vld [vmem:[%s323 + $0x14] sm:$0xf]
        %v402 = vld [vmem:[%s323 + $0x18] sm:$0xf]
        %v403 = vld [vmem:[%s323 + $0x1c] sm:$0xf]
        %v404 = vld [vmem:[%s323 + $0x20] sm:$0xf]
        %v405 = vld [vmem:[%s323 + $0x24] sm:$0xf]
        %v406 = vld [vmem:[%s323 + $0x28] sm:$0xf]
        %v407 = vld [vmem:[%s323 + $0x2c] sm:$0xf]
        %v408 = vld [vmem:[%s323 + $0x30] sm:$0xf]
        %v409 = vld [vmem:[%s323 + $0x34] sm:$0xf]
        %v410 = vld [vmem:[%s323 + $0x38] sm:$0xf]
        %v411 = vld [vmem:[%s323 + $0x3c] sm:$0xf]
        %v428 = vunpack.c.l.b16 %v327
        %v429 = vunpack.c.l.b16 %v328
        %v430 = vunpack.c.l.b16 %v330
        %v431 = vunpack.c.l.b16 %v331
        %v432 = vunpack.c.l.b16 %v333
        %v433 = vunpack.c.l.b16 %v334
        %v434 = vunpack.c.l.b16 %v336
        %v435 = vunpack.c.l.b16 %v337
        %v436 = vunpack.c.l.b16 %v339
        %v437 = vunpack.c.l.b16 %v340
        %v438 = vunpack.c.l.b16 %v342
        %v439 = vunpack.c.l.b16 %v343
        %v440 = vunpack.c.l.b16 %v345
        %v441 = vunpack.c.l.b16 %v346
        %v442 = vunpack.c.l.b16 %v348
        %v443 = vunpack.c.l.b16 %v349
        %v444 = vpack.c.b16 %v429, %v428
        %v445 = vpack.c.b16 %v431, %v430
        %v446 = vpack.c.b16 %v433, %v432
        %v447 = vpack.c.b16 %v435, %v434
        %v448 = vpack.c.b16 %v437, %v436
        %v449 = vpack.c.b16 %v439, %v438
        %v450 = vpack.c.b16 %v441, %v440
        %v451 = vpack.c.b16 %v443, %v442
        %v468 = vunpack.c.l.b16 %v354
        %v469 = vunpack.c.l.b16 %v355
        %v470 = vunpack.c.l.b16 %v356
        %v471 = vunpack.c.l.b16 %v357
        %v472 = vunpack.c.l.b16 %v358
        %v473 = vunpack.c.l.b16 %v359
        %v474 = vunpack.c.l.b16 %v360
        %v475 = vunpack.c.l.b16 %v361
        %v476 = vunpack.c.l.b16 %v362
        %v477 = vunpack.c.l.b16 %v363
        %v478 = vunpack.c.l.b16 %v364
        %v479 = vunpack.c.l.b16 %v365
        %v480 = vunpack.c.l.b16 %v366
        %v481 = vunpack.c.l.b16 %v367
        %v482 = vunpack.c.l.b16 %v368
        %v483 = vunpack.c.l.b16 %v369
        %v484 = vpack.c.b16 %v469, %v468
        %v485 = vpack.c.b16 %v471, %v470
        %v486 = vpack.c.b16 %v473, %v472
        %v487 = vpack.c.b16 %v475, %v474
        %v488 = vpack.c.b16 %v477, %v476
        %v489 = vpack.c.b16 %v479, %v478
        %v490 = vpack.c.b16 %v481, %v480
        %v491 = vpack.c.b16 %v483, %v482
        %492 = vrot.lane.b32.xlu0 %v484, 4
        %v493 = vpop.permute.xlu0 %492
        %494 = vrot.lane.b32.xlu0 %v485, 4
        %v495 = vpop.permute.xlu0 %494
        %496 = vrot.lane.b32.xlu0 %v486, 4
        %v497 = vpop.permute.xlu0 %496
        %498 = vrot.lane.b32.xlu0 %v487, 4
        %v499 = vpop.permute.xlu0 %498
        %500 = vrot.lane.b32.xlu0 %v488, 4
        %v501 = vpop.permute.xlu0 %500
        %502 = vrot.lane.b32.xlu0 %v489, 4
        %v503 = vpop.permute.xlu0 %502
        %504 = vrot.lane.b32.xlu0 %v490, 4
        %v505 = vpop.permute.xlu0 %504
        %506 = vrot.lane.b32.xlu0 %v491, 4
        %v507 = vpop.permute.xlu0 %506
        %v516 = vunpack.c.l.b16 %v329
        %v517 = vunpack.c.l.b16 %v332
        %v518 = vunpack.c.l.b16 %v335
        %v519 = vunpack.c.l.b16 %v338
        %v520 = vunpack.c.l.b16 %v341
        %v521 = vunpack.c.l.b16 %v344
        %v522 = vunpack.c.l.b16 %v347
        %v523 = vunpack.c.l.b16 %v350
        %v524 = vpack.c.b16 %v516, %v516
        %v525 = vpack.c.b16 %v517, %v517
        %v526 = vpack.c.b16 %v518, %v518
        %v527 = vpack.c.b16 %v519, %v519
        %v528 = vpack.c.b16 %v520, %v520
        %v529 = vpack.c.b16 %v521, %v521
        %v530 = vpack.c.b16 %v522, %v522
        %v531 = vpack.c.b16 %v523, %v523
        %vm532 = vsmask.f32 7424
        %v534 = vshrl.u32 %v444, 16
        %v536 = vshll.u32 %v444, 16
        %v538 = vrot.slane %v536, 1
        %v539 = vor.u32 %v534, %v538
        %v541 = vshll.u32 %v524, 16
        %v543 = vrot.slane %v541, 1
        %v544 = vsel %vm532, %v539, %v543
        %v546 = vshrl.u32 %v445, 16
        %v548 = vshll.u32 %v445, 16
        %v550 = vrot.slane %v548, 1
        %v551 = vor.u32 %v546, %v550
        %v553 = vshll.u32 %v525, 16
        %v555 = vrot.slane %v553, 1
        %v556 = vsel %vm532, %v551, %v555
        %v558 = vshrl.u32 %v446, 16
        %v560 = vshll.u32 %v446, 16
        %v562 = vrot.slane %v560, 1
        %v563 = vor.u32 %v558, %v562
        %v565 = vshll.u32 %v526, 16
        %v567 = vrot.slane %v565, 1
        %v568 = vsel %vm532, %v563, %v567
        %v570 = vshrl.u32 %v447, 16
        %v572 = vshll.u32 %v447, 16
        %v574 = vrot.slane %v572, 1
        %v575 = vor.u32 %v570, %v574
        %v577 = vshll.u32 %v527, 16
        %v579 = vrot.slane %v577, 1
        %v580 = vsel %vm532, %v575, %v579
        %v582 = vshrl.u32 %v448, 16
        %v584 = vshll.u32 %v448, 16
        %v586 = vrot.slane %v584, 1
        %v587 = vor.u32 %v582, %v586
        %v589 = vshll.u32 %v528, 16
        %v591 = vrot.slane %v589, 1
        %v592 = vsel %vm532, %v587, %v591
        %v594 = vshrl.u32 %v449, 16
        %v596 = vshll.u32 %v449, 16
        %v598 = vrot.slane %v596, 1
        %v599 = vor.u32 %v594, %v598
        %v601 = vshll.u32 %v529, 16
        %v603 = vrot.slane %v601, 1
        %v604 = vsel %vm532, %v599, %v603
        %v606 = vshrl.u32 %v450, 16
        %v608 = vshll.u32 %v450, 16
        %v610 = vrot.slane %v608, 1
        %v611 = vor.u32 %v606, %v610
        %v613 = vshll.u32 %v530, 16
        %v615 = vrot.slane %v613, 1
        %v616 = vsel %vm532, %v611, %v615
        %v618 = vshrl.u32 %v451, 16
        %v620 = vshll.u32 %v451, 16
        %v622 = vrot.slane %v620, 1
        %v623 = vor.u32 %v618, %v622
        %v625 = vshll.u32 %v531, 16
        %v627 = vrot.slane %v625, 1
        %v628 = vsel %vm532, %v623, %v627
        %629 = vrot.lane.b32.xlu0 %v544, 8
        %v630 = vpop.permute.xlu0 %629
        %631 = vrot.lane.b32.xlu0 %v556, 8
        %v632 = vpop.permute.xlu0 %631
        %633 = vrot.lane.b32.xlu0 %v568, 8
        %v634 = vpop.permute.xlu0 %633
        %635 = vrot.lane.b32.xlu0 %v580, 8
        %v636 = vpop.permute.xlu0 %635
        %637 = vrot.lane.b32.xlu0 %v592, 8
        %v638 = vpop.permute.xlu0 %637
        %639 = vrot.lane.b32.xlu0 %v604, 8
        %v640 = vpop.permute.xlu0 %639
        %641 = vrot.lane.b32.xlu0 %v616, 8
        %v642 = vpop.permute.xlu0 %641
        %643 = vrot.lane.b32.xlu0 %v628, 8
        %v644 = vpop.permute.xlu0 %643
        %v661 = vunpack.c.l.b16 %v372
        %v662 = vunpack.c.l.b16 %v373
        %v663 = vunpack.c.l.b16 %v375
        %v664 = vunpack.c.l.b16 %v376
        %v665 = vunpack.c.l.b16 %v378
        %v666 = vunpack.c.l.b16 %v379
        %v667 = vunpack.c.l.b16 %v381
        %v668 = vunpack.c.l.b16 %v382
        %v669 = vunpack.c.l.b16 %v384
        %v670 = vunpack.c.l.b16 %v385
        %v671 = vunpack.c.l.b16 %v387
        %v672 = vunpack.c.l.b16 %v388
        %v673 = vunpack.c.l.b16 %v390
        %v674 = vunpack.c.l.b16 %v391
        %v675 = vunpack.c.l.b16 %v393
        %v676 = vunpack.c.l.b16 %v394
        %v677 = vpack.c.b16 %v662, %v661
        %v678 = vpack.c.b16 %v664, %v663
        %v679 = vpack.c.b16 %v666, %v665
        %v680 = vpack.c.b16 %v668, %v667
        %v681 = vpack.c.b16 %v670, %v669
        %v682 = vpack.c.b16 %v672, %v671
        %v683 = vpack.c.b16 %v674, %v673
        %v684 = vpack.c.b16 %v676, %v675
        %685 = vrot.lane.b32.xlu0 %v677, 12
        %v686 = vpop.permute.xlu0 %685
        %687 = vrot.lane.b32.xlu0 %v678, 12
        %v688 = vpop.permute.xlu0 %687
        %689 = vrot.lane.b32.xlu0 %v679, 12
        %v690 = vpop.permute.xlu0 %689
        %691 = vrot.lane.b32.xlu0 %v680, 12
        %v692 = vpop.permute.xlu0 %691
        %693 = vrot.lane.b32.xlu0 %v681, 12
        %v694 = vpop.permute.xlu0 %693
        %695 = vrot.lane.b32.xlu0 %v682, 12
        %v696 = vpop.permute.xlu0 %695
        %697 = vrot.lane.b32.xlu0 %v683, 12
        %v698 = vpop.permute.xlu0 %697
        %699 = vrot.lane.b32.xlu0 %v684, 12
        %v700 = vpop.permute.xlu0 %699
        %v717 = vunpack.c.l.b16 %v396
        %v718 = vunpack.c.l.b16 %v397
        %v719 = vunpack.c.l.b16 %v398
        %v720 = vunpack.c.l.b16 %v399
        %v721 = vunpack.c.l.b16 %v400
        %v722 = vunpack.c.l.b16 %v401
        %v723 = vunpack.c.l.b16 %v402
        %v724 = vunpack.c.l.b16 %v403
        %v725 = vunpack.c.l.b16 %v404
        %v726 = vunpack.c.l.b16 %v405
        %v727 = vunpack.c.l.b16 %v406
        %v728 = vunpack.c.l.b16 %v407
        %v729 = vunpack.c.l.b16 %v408
        %v730 = vunpack.c.l.b16 %v409
        %v731 = vunpack.c.l.b16 %v410
        %v732 = vunpack.c.l.b16 %v411
        %v733 = vpack.c.b16 %v718, %v717
        %v734 = vpack.c.b16 %v720, %v719
        %v735 = vpack.c.b16 %v722, %v721
        %v736 = vpack.c.b16 %v724, %v723
        %v737 = vpack.c.b16 %v726, %v725
        %v738 = vpack.c.b16 %v728, %v727
        %v739 = vpack.c.b16 %v730, %v729
        %v740 = vpack.c.b16 %v732, %v731
        %741 = vrot.lane.b32.xlu0 %v733, 16
        %v742 = vpop.permute.xlu0 %741
        %743 = vrot.lane.b32.xlu0 %v734, 16
        %v744 = vpop.permute.xlu0 %743
        %745 = vrot.lane.b32.xlu0 %v735, 16
        %v746 = vpop.permute.xlu0 %745
        %747 = vrot.lane.b32.xlu0 %v736, 16
        %v748 = vpop.permute.xlu0 %747
        %749 = vrot.lane.b32.xlu0 %v737, 16
        %v750 = vpop.permute.xlu0 %749
        %751 = vrot.lane.b32.xlu0 %v738, 16
        %v752 = vpop.permute.xlu0 %751
        %753 = vrot.lane.b32.xlu0 %v739, 16
        %v754 = vpop.permute.xlu0 %753
        %755 = vrot.lane.b32.xlu0 %v740, 16
        %v756 = vpop.permute.xlu0 %755
        %v765 = vunpack.c.l.b16 %v374
        %v766 = vunpack.c.l.b16 %v377
        %v767 = vunpack.c.l.b16 %v380
        %v768 = vunpack.c.l.b16 %v383
        %v769 = vunpack.c.l.b16 %v386
        %v770 = vunpack.c.l.b16 %v389
        %v771 = vunpack.c.l.b16 %v392
        %v772 = vunpack.c.l.b16 %v395
        %v773 = vpack.c.b16 %v765, %v765
        %v774 = vpack.c.b16 %v766, %v766
        %v775 = vpack.c.b16 %v767, %v767
        %v776 = vpack.c.b16 %v768, %v768
        %v777 = vpack.c.b16 %v769, %v769
        %v778 = vpack.c.b16 %v770, %v770
        %v779 = vpack.c.b16 %v771, %v771
        %v780 = vpack.c.b16 %v772, %v772
        %v782 = vshrl.u32 %v677, 16
        %v784 = vshll.u32 %v677, 16
        %v786 = vrot.slane %v784, 1
        %v787 = vor.u32 %v782, %v786
        %v789 = vshll.u32 %v773, 16
        %v791 = vrot.slane %v789, 1
        %v792 = vsel %vm532, %v787, %v791
        %v794 = vshrl.u32 %v678, 16
        %v796 = vshll.u32 %v678, 16
        %v798 = vrot.slane %v796, 1
        %v799 = vor.u32 %v794, %v798
        %v801 = vshll.u32 %v774, 16
        %v803 = vrot.slane %v801, 1
        %v804 = vsel %vm532, %v799, %v803
        %v806 = vshrl.u32 %v679, 16
        %v808 = vshll.u32 %v679, 16
        %v810 = vrot.slane %v808, 1
        %v811 = vor.u32 %v806, %v810
        %v813 = vshll.u32 %v775, 16
        %v815 = vrot.slane %v813, 1
        %v816 = vsel %vm532, %v811, %v815
        %v818 = vshrl.u32 %v680, 16
        %v820 = vshll.u32 %v680, 16
        %v822 = vrot.slane %v820, 1
        %v823 = vor.u32 %v818, %v822
        %v825 = vshll.u32 %v776, 16
        %v827 = vrot.slane %v825, 1
        %v828 = vsel %vm532, %v823, %v827
        %v830 = vshrl.u32 %v681, 16
        %v832 = vshll.u32 %v681, 16
        %v834 = vrot.slane %v832, 1
        %v835 = vor.u32 %v830, %v834
        %v837 = vshll.u32 %v777, 16
        %v839 = vrot.slane %v837, 1
        %v840 = vsel %vm532, %v835, %v839
        %v842 = vshrl.u32 %v682, 16
        %v844 = vshll.u32 %v682, 16
        %v846 = vrot.slane %v844, 1
        %v847 = vor.u32 %v842, %v846
        %v849 = vshll.u32 %v778, 16
        %v851 = vrot.slane %v849, 1
        %v852 = vsel %vm532, %v847, %v851
        %v854 = vshrl.u32 %v683, 16
        %v856 = vshll.u32 %v683, 16
        %v858 = vrot.slane %v856, 1
        %v859 = vor.u32 %v854, %v858
        %v861 = vshll.u32 %v779, 16
        %v863 = vrot.slane %v861, 1
        %v864 = vsel %vm532, %v859, %v863
        %v866 = vshrl.u32 %v684, 16
        %v868 = vshll.u32 %v684, 16
        %v870 = vrot.slane %v868, 1
        %v871 = vor.u32 %v866, %v870
        %v873 = vshll.u32 %v780, 16
        %v875 = vrot.slane %v873, 1
        %v876 = vsel %vm532, %v871, %v875
        %877 = vrot.lane.b32.xlu0 %v792, 20
        %v878 = vpop.permute.xlu0 %877
        %879 = vrot.lane.b32.xlu0 %v804, 20
        %v880 = vpop.permute.xlu0 %879
        %881 = vrot.lane.b32.xlu0 %v816, 20
        %v882 = vpop.permute.xlu0 %881
        %883 = vrot.lane.b32.xlu0 %v828, 20
        %v884 = vpop.permute.xlu0 %883
        %885 = vrot.lane.b32.xlu0 %v840, 20
        %v886 = vpop.permute.xlu0 %885
        %887 = vrot.lane.b32.xlu0 %v852, 20
        %v888 = vpop.permute.xlu0 %887
        %889 = vrot.lane.b32.xlu0 %v864, 20
        %v890 = vpop.permute.xlu0 %889
        %891 = vrot.lane.b32.xlu0 %v876, 20
        %v892 = vpop.permute.xlu0 %891
        %v895 = vunpack.c.l.b16 %v351
        %v896 = vunpack.c.l.b16 %v352
        %v897 = vpack.c.b16 %v896, %v895
        %898 = vrot.lane.b32.xlu0 %v445, 24
        %v899 = vpop.permute.xlu0 %898
        %900 = vrot.lane.b32.xlu0 %v446, 24
        %v901 = vpop.permute.xlu0 %900
        %902 = vrot.lane.b32.xlu0 %v447, 24
        %v903 = vpop.permute.xlu0 %902
        %904 = vrot.lane.b32.xlu0 %v448, 24
        %v905 = vpop.permute.xlu0 %904
        %906 = vrot.lane.b32.xlu0 %v449, 24
        %v907 = vpop.permute.xlu0 %906
        %908 = vrot.lane.b32.xlu0 %v450, 24
        %v909 = vpop.permute.xlu0 %908
        %910 = vrot.lane.b32.xlu0 %v451, 24
        %v911 = vpop.permute.xlu0 %910
        %912 = vrot.lane.b32.xlu0 %v897, 24
        %v913 = vpop.permute.xlu0 %912
        %v916 = vunpack.c.l.b16 %v370
        %v917 = vunpack.c.l.b16 %v371
        %v918 = vpack.c.b16 %v917, %v916
        %919 = vrot.lane.b32.xlu0 %v485, 28
        %v920 = vpop.permute.xlu0 %919
        %921 = vrot.lane.b32.xlu0 %v486, 28
        %v922 = vpop.permute.xlu0 %921
        %923 = vrot.lane.b32.xlu0 %v487, 28
        %v924 = vpop.permute.xlu0 %923
        %925 = vrot.lane.b32.xlu0 %v488, 28
        %v926 = vpop.permute.xlu0 %925
        %927 = vrot.lane.b32.xlu0 %v489, 28
        %v928 = vpop.permute.xlu0 %927
        %929 = vrot.lane.b32.xlu0 %v490, 28
        %v930 = vpop.permute.xlu0 %929
        %931 = vrot.lane.b32.xlu0 %v491, 28
        %v932 = vpop.permute.xlu0 %931
        %933 = vrot.lane.b32.xlu0 %v918, 28
        %v934 = vpop.permute.xlu0 %933
        %v936 = vunpack.c.l.b16 %v353
        %v937 = vpack.c.b16 %v936, %v936
        %v939 = vshrl.u32 %v897, 16
        %v941 = vshll.u32 %v897, 16
        %v943 = vrot.slane %v941, 1
        %v944 = vor.u32 %v939, %v943
        %v946 = vshll.u32 %v937, 16
        %v948 = vrot.slane %v946, 1
        %v949 = vsel %vm532, %v944, %v948
        %950 = vrot.lane.b32.xlu0 %v556, 32
        %v951 = vpop.permute.xlu0 %950
        %952 = vrot.lane.b32.xlu0 %v568, 32
        %v953 = vpop.permute.xlu0 %952
        %954 = vrot.lane.b32.xlu0 %v580, 32
        %v955 = vpop.permute.xlu0 %954
        %956 = vrot.lane.b32.xlu0 %v592, 32
        %v957 = vpop.permute.xlu0 %956
        %958 = vrot.lane.b32.xlu0 %v604, 32
        %v959 = vpop.permute.xlu0 %958
        %960 = vrot.lane.b32.xlu0 %v616, 32
        %v961 = vpop.permute.xlu0 %960
        %962 = vrot.lane.b32.xlu0 %v628, 32
        %v963 = vpop.permute.xlu0 %962
        %964 = vrot.lane.b32.xlu0 %v949, 32
        %v965 = vpop.permute.xlu0 %964
        %vm966 = vcmask 31744
        %v968 = vsel %vm966, %v444, %v493
        %v970 = vsel %vm966, %v445, %v495
        %v972 = vsel %vm966, %v446, %v497
        %v974 = vsel %vm966, %v447, %v499
        %v976 = vsel %vm966, %v448, %v501
        %v978 = vsel %vm966, %v449, %v503
        %v980 = vsel %vm966, %v450, %v505
        %v982 = vsel %vm966, %v451, %v507
        %vm983 = vcmask 64512
        %v985 = vsel %vm983, %v968, %v630
        %v987 = vsel %vm983, %v970, %v632
        %v989 = vsel %vm983, %v972, %v634
        %v991 = vsel %vm983, %v974, %v636
        %v993 = vsel %vm983, %v976, %v638
        %v995 = vsel %vm983, %v978, %v640
        %v997 = vsel %vm983, %v980, %v642
        %v999 = vsel %vm983, %v982, %v644
        %vm1000 = vcmask 97280
        %v1002 = vsel %vm1000, %v985, %v686
        %v1004 = vsel %vm1000, %v987, %v688
        %v1006 = vsel %vm1000, %v989, %v690
        %v1008 = vsel %vm1000, %v991, %v692
        %v1010 = vsel %vm1000, %v993, %v694
        %v1012 = vsel %vm1000, %v995, %v696
        %v1014 = vsel %vm1000, %v997, %v698
        %v1016 = vsel %vm1000, %v999, %v700
        %vm1017 = vcmask 130048
        %v1019 = vsel %vm1017, %v1002, %v742
        %v1021 = vsel %vm1017, %v1004, %v744
        %v1023 = vsel %vm1017, %v1006, %v746
        %v1025 = vsel %vm1017, %v1008, %v748
        %v1027 = vsel %vm1017, %v1010, %v750
        %v1029 = vsel %vm1017, %v1012, %v752
        %v1031 = vsel %vm1017, %v1014, %v754
        %v1033 = vsel %vm1017, %v1016, %v756
        %vm1034 = vcmask 162816
        %v1036 = vsel %vm1034, %v1019, %v878
        %v1038 = vsel %vm1034, %v1021, %v880
        %v1040 = vsel %vm1034, %v1023, %v882
        %v1042 = vsel %vm1034, %v1025, %v884
        %v1044 = vsel %vm1034, %v1027, %v886
        %v1046 = vsel %vm1034, %v1029, %v888
        %v1048 = vsel %vm1034, %v1031, %v890
        %v1050 = vsel %vm1034, %v1033, %v892
        %vm1051 = vcmask 195584
        %v1053 = vsel %vm1051, %v1036, %v899
        %v1055 = vsel %vm1051, %v1038, %v901
        %v1057 = vsel %vm1051, %v1040, %v903
        %v1059 = vsel %vm1051, %v1042, %v905
        %v1061 = vsel %vm1051, %v1044, %v907
        %v1063 = vsel %vm1051, %v1046, %v909
        %v1065 = vsel %vm1051, %v1048, %v911
        %v1067 = vsel %vm1051, %v1050, %v913
        %vm1068 = vcmask 228352
        %v1070 = vsel %vm1068, %v1053, %v920
        %v1072 = vsel %vm1068, %v1055, %v922
        %v1074 = vsel %vm1068, %v1057, %v924
        %v1076 = vsel %vm1068, %v1059, %v926
        %v1078 = vsel %vm1068, %v1061, %v928
        %v1080 = vsel %vm1068, %v1063, %v930
        %v1082 = vsel %vm1068, %v1065, %v932
        %v1084 = vsel %vm1068, %v1067, %v934
        %vm1085 = vcmask 261120
        %v1087 = vsel %vm1085, %v1070, %v951
        %v1089 = vsel %vm1085, %v1072, %v953
        %v1091 = vsel %vm1085, %v1074, %v955
        %v1093 = vsel %vm1085, %v1076, %v957
        %v1095 = vsel %vm1085, %v1078, %v959
        %v1097 = vsel %vm1085, %v1080, %v961
        %v1099 = vsel %vm1085, %v1082, %v963
        %v1101 = vsel %vm1085, %v1084, %v965
        %v1102 = vld [vmem:[%s4] sm:$0xf]
        %v1103 = vld [vmem:[%s4 + $0x4] sm:$0xf]
        %v1104 = vld [vmem:[%s4 + $0x8] sm:$0xf]
        %v1105 = vld [vmem:[%s4 + $0xc] sm:$0xf]
        %v1106 = vld [vmem:[%s4 + $0x10] sm:$0x3]
        %v1112 = vunpack.c.l.b16 %v1102
        %v1113 = vunpack.c.l.b16 %v1103
        %v1114 = vunpack.c.l.b16 %v1104
        %v1115 = vunpack.c.l.b16 %v1105
        %v1116 = vunpack.c.l.b16 %v1106
        %v1117 = vpack.c.b16 %v1113, %v1112
        %v1118 = vpack.c.b16 %v1115, %v1114
        %v1119 = vpack.c.b16 %v1116, %v1116
        %vm1122 = vcmask 293888
        %v1123 = vsel %vm1122, %v1087, 0
        %v1125 = vsel %vm1122, %v1089, 0
        %v1127 = vsel %vm1122, %v1091, 0
        %v1129 = vsel %vm1122, %v1093, 0
        %v1131 = vsel %vm1122, %v1095, 0
        %v1133 = vsel %vm1122, %v1097, 0
        %v1135 = vsel %vm1122, %v1099, 0
        %v1137 = vsel %vm1122, %v1101, 0
        %vm1139 = vcmask 1041408
        %v1141 = vsel %vm1139, %v1119, 0
        %1143 = vmatprep.subr.bf16.mxu0 0
        %1144 = vmatpush1.bf16.msra.mxu0 0
        %1145 = vmatprep.subr.bf16.mxu0 0
        %1146 = vmatpush1.bf16.msra.mxu0 0
        %1147 = vmatprep.subr.bf16.mxu0 0
        %1148 = vmatpush1.bf16.msra.mxu0 0
        %1149 = vmatprep.subr.bf16.mxu0 0
        %1150 = vmatpush1.bf16.msra.mxu0 0
        %1151 = vmatprep.subr.bf16.mxu0 0
        %1152 = vmatpush1.bf16.msra.mxu0 0
        %1153 = vmatprep.subr.bf16.mxu0 0
        %1154 = vmatpush1.bf16.msra.mxu0 %v1141
        %1155 = vmatprep.subr.bf16.mxu0 0
        %1156 = vmatpush1.bf16.msra.mxu0 %v1118
        %1157 = vmatprep.subr.bf16.mxu0 0
        %1158 = vmatpush1.bf16.msra.mxu0 %v1117
        %1159 = vmatprep.subr.bf16.mxu0 0
        %1160 = vmatpush2.bf16.msra.mxu0 0
        %1161 = vmatprep.subr.bf16.mxu0 0
        %1162 = vmatpush2.bf16.msra.mxu0 0
        %1163 = vmatprep.subr.bf16.mxu0 0
        %1164 = vmatpush2.bf16.msra.mxu0 0
        %1165 = vmatprep.subr.bf16.mxu0 0
        %1166 = vmatpush2.bf16.msra.mxu0 0
        %1167 = vmatprep.subr.bf16.mxu0 0
        %1168 = vmatpush2.bf16.msra.mxu0 0
        %1169 = vmatprep.subr.bf16.mxu0 0
        %1170 = vmatpush2.bf16.msra.mxu0 0
        %1171 = vmatprep.subr.bf16.mxu0 0
        %1172 = vmatpush2.bf16.msra.mxu0 0
        %1173 = vmatprep.subr.bf16.mxu0 0
        %1174 = vmatpush2.bf16.msra.mxu0 0
        %1175 = vmatprep.mubr.bf16.mxu0 0
        %1176 = vmatmul.mubr.bf16.gmra.mxu0 %v1123
        %v1177 = vpop.f32.mrf.mxu0
        %v1178 = vadd.f32 0.0, %v1177
        %v1179 = vpop.f32.mrf.mxu0
        %v1180 = vpop.f32.mrf.mxu0
        %v1181 = vadd.f32 0.0, %v1180
        %v1182 = vpop.f32.mrf.mxu0
        %1183 = vmatprep.mubr.bf16.mxu0 0
        %1184 = vmatmul.mubr.bf16.gmra.mxu0 %v1125
        %v1185 = vpop.f32.mrf.mxu0
        %v1186 = vadd.f32 0.0, %v1185
        %v1187 = vpop.f32.mrf.mxu0
        %v1188 = vpop.f32.mrf.mxu0
        %v1189 = vadd.f32 0.0, %v1188
        %v1190 = vpop.f32.mrf.mxu0
        %1191 = vmatprep.mubr.bf16.mxu0 0
        %1192 = vmatmul.mubr.bf16.gmra.mxu0 %v1127
        %v1193 = vpop.f32.mrf.mxu0
        %v1194 = vadd.f32 0.0, %v1193
        %v1195 = vpop.f32.mrf.mxu0
        %v1196 = vpop.f32.mrf.mxu0
        %v1197 = vadd.f32 0.0, %v1196
        %v1198 = vpop.f32.mrf.mxu0
        %1199 = vmatprep.mubr.bf16.mxu0 0
        %1200 = vmatmul.mubr.bf16.gmra.mxu0 %v1129
        %v1201 = vpop.f32.mrf.mxu0
        %v1202 = vadd.f32 0.0, %v1201
        %v1203 = vpop.f32.mrf.mxu0
        %v1204 = vpop.f32.mrf.mxu0
        %v1205 = vadd.f32 0.0, %v1204
        %v1206 = vpop.f32.mrf.mxu0
        %1207 = vmatprep.mubr.bf16.mxu0 0
        %1208 = vmatmul.mubr.bf16.gmra.mxu0 %v1131
        %v1209 = vpop.f32.mrf.mxu0
        %v1210 = vadd.f32 0.0, %v1209
        %v1211 = vpop.f32.mrf.mxu0
        %v1212 = vpop.f32.mrf.mxu0
        %v1213 = vadd.f32 0.0, %v1212
        %v1214 = vpop.f32.mrf.mxu0
        %1215 = vmatprep.mubr.bf16.mxu0 0
        %1216 = vmatmul.mubr.bf16.gmra.mxu0 %v1133
        %v1217 = vpop.f32.mrf.mxu0
        %v1218 = vadd.f32 0.0, %v1217
        %v1219 = vpop.f32.mrf.mxu0
        %v1220 = vpop.f32.mrf.mxu0
        %v1221 = vadd.f32 0.0, %v1220
        %v1222 = vpop.f32.mrf.mxu0
        %1223 = vmatprep.mubr.bf16.mxu0 0
        %1224 = vmatmul.mubr.bf16.gmra.mxu0 %v1135
        %v1225 = vpop.f32.mrf.mxu0
        %v1226 = vadd.f32 0.0, %v1225
        %v1227 = vpop.f32.mrf.mxu0
        %v1228 = vpop.f32.mrf.mxu0
        %v1229 = vadd.f32 0.0, %v1228
        %v1230 = vpop.f32.mrf.mxu0
        %1231 = vmatprep.mubr.bf16.mxu0 0
        %1232 = vmatmul.mubr.bf16.gmra.mxu0 %v1137
        %v1233 = vpop.f32.mrf.mxu0
        %v1234 = vadd.f32 0.0, %v1233
        %v1235 = vpop.f32.mrf.mxu0
        %v1236 = vpop.f32.mrf.mxu0
        %v1237 = vadd.f32 0.0, %v1236
        %v1238 = vpop.f32.mrf.mxu0
        %1239 = vdwg.mxu0
        %1240 = vst [vmem:[%s296] sm:$0xff] %v1178
        %1241 = vst [vmem:[%s296 + $0x8] sm:$0xff] %v1181
        %1242 = vst [vmem:[%s296 + $0x10] sm:$0xff] %v1186
        %1243 = vst [vmem:[%s296 + $0x18] sm:$0xff] %v1189
        %1244 = vst [vmem:[%s296 + $0x20] sm:$0xff] %v1194
        %1245 = vst [vmem:[%s296 + $0x28] sm:$0xff] %v1197
        %1246 = vst [vmem:[%s296 + $0x30] sm:$0xff] %v1202
        %1247 = vst [vmem:[%s296 + $0x38] sm:$0xff] %v1205
        %1248 = vst [vmem:[%s296 + $0x40] sm:$0xff] %v1210
        %1249 = vst [vmem:[%s296 + $0x48] sm:$0xff] %v1213
        %1250 = vst [vmem:[%s296 + $0x50] sm:$0xff] %v1218
        %1251 = vst [vmem:[%s296 + $0x58] sm:$0xff] %v1221
        %1252 = vst [vmem:[%s296 + $0x60] sm:$0xff] %v1226
        %1253 = vst [vmem:[%s296 + $0x68] sm:$0xff] %v1229
        %1254 = vst [vmem:[%s296 + $0x70] sm:$0xff] %v1234
        %1255 = vst [vmem:[%s296 + $0x78] sm:$0xff] %v1237
        %s1256 = sand.u32 %s174, 1
        %s1257 = scalar_lea.sflag [#allocation3], %s1256
        %s1258 = sand.u32 %s174, 1
        %s1259 = smul.addr %s1258, 128
        %s1260 = scalar_lea.vmem [#allocation2], %s1259
        // Predicated region
        $region41: #{tpu_custom_call.1} parent=39 // pred_check
          %p1261 = pneg %p184
        $region42: #{tpu_custom_call.1} parent=39 // pred_check_branch
          %1263 = sbr.rel (%p1261) target = $region44
        $region43: #{tpu_custom_call.1} parent=39 // pred_region
          %s1264 = smul.u32 16, %s24
          %s1266 = ssub.s32 2048, 2048
          %1267 = vsyncadd %s1257, %s1266
          %s1268 = smul.addr %s23, 16
          %s1269 = sadd.s32 %s1264, %s1268
          %s1270 = smul.addr %s1269, 128
          %s1271 = scalar_lea.hbm %s5, %s1270
          %s1272 = sshll.u32 %s1260, 4
          %s1273 = int_to_ptr.vmem [resolvable:$true] %s1272
          %1278 = dma.vmem_to_hbm [thread:$0]  %s1273, 2048, %s1271, %s1257, 128, 128, 8
        $region44: #{tpu_custom_call.1} parent=39 // pred_fallthru
          _
      $region40: #{tpu_custom_call.1} parent=5 // pred_fallthru
        _
      %p1279 = scmp.le.s32.totalorder 2, %s14
      // Predicated region
      $region45: #{tpu_custom_call.1} parent=5 // pred_check
        %p1280 = pneg %p1279
      $region46: #{tpu_custom_call.1} parent=5 // pred_check_branch
        %1282 = sbr.rel (%p1280) target = $region48
      $region47: #{tpu_custom_call.1} parent=5 // pred_region
        %s1283 = ssub.s32 %s14, 2
        // Predicated region
        $region49: #{tpu_custom_call.1} parent=47 // pred_check
          %p1284 = pneg %p190
        $region50: #{tpu_custom_call.1} parent=47 // pred_check_branch
          %1286 = sbr.rel (%p1284) target = $region52
        $region51: #{tpu_custom_call.1} parent=47 // pred_region
          %s1287 = sand.u32 %s175, 1
          %s1288 = scalar_lea.sflag [#allocation3], %s1287
          %s1289 = sand.u32 %s175, 1
          %s1290 = smul.addr %s1289, 128
          %s1291 = scalar_lea.vmem [#allocation2], %s1290
          %1292 = dma.done %s1288, 2048
        $region52: #{tpu_custom_call.1} parent=47 // pred_fallthru
          _
      $region48: #{tpu_custom_call.1} parent=5 // pred_fallthru
        _
    $region6: #{tpu_custom_call.1} parent=1 // loop_footer
      %s18 = sadd.s32 1, %s14
    $region7: #{tpu_custom_call.1} parent=1 // loop_footer_branch
      %13 = sbr.rel target = $region3
    $region8: #{tpu_custom_call.1} parent=1 // loop_exit
      _
    %1293 = vsyncpa [#allocation3], 1
    %s1294 = scalar_lea.sflag [#allocation3], 1
    %1295 = vsyncpa %s1294, 1

</llo_original>
